<compile_context>
chip_gen: v5e
topology: v5e:2x2
jax: 0.10.0
libtpu: 0.0.40
codegen_flags: <defaults>
</compile_context>

<pallas_src>
import jax
import jax.numpy as jnp
from jax.experimental import pallas as pl
from jax.experimental.pallas import tpu as pltpu

LANES = 128


def count_nsr_kernel(params_ref, val_ref, x_ref, out_ref, acc_ref, vza_ref):
    # params (SMEM, scalar prefetch): [za, zb, g0, g1, g2]
    #   za = zeta*(o1sel0 - o2sel0), zb = zeta*(o1sel1 - o2sel1)
    #   g0 = -(bias + wzero)/2, g1 = -wsign/2, g2 = wzero
    # Per column: t = tanh(val*za + x*zb); th = tanh(g0 + t*(g1 + g2*t));
    #   contribution (1 - state) = 0.5 + 0.5*th
    # count = 0.5*(S-1) + 0.5*(sum_{all columns} th - th_col0)
    tb, ts = x_ref.shape
    j = pl.program_id(1)
    nj = pl.num_programs(1)

    za = params_ref[0]
    zb = params_ref[1]
    g0 = params_ref[2]
    g1 = params_ref[3]
    g2 = params_ref[4]

    if ts % LANES == 0:
        nchunks = ts // LANES

        @pl.when(j == 0)
        def _():
            # Zero the (tb, 128) lane accumulator and hoist the val*za lane-broadcast
            # (reused by every S tile of this batch tile).
            acc_ref[...] = jnp.zeros_like(acc_ref)
            vza_ref[...] = jnp.broadcast_to(val_ref[...] * za, vza_ref.shape)

        vza = vza_ref[...]                                   # (tb, 128)
        folded = None
        for c in range(nchunks):                             # static, unrolled
            xg = x_ref[:, c * LANES:(c + 1) * LANES]         # aligned (tb, 128) load
            t = jnp.tanh(vza + xg * zb)                      # EUP
            th = jnp.tanh(g0 + t * (g1 + g2 * t))            # EUP, Horner on VPU
            folded = th if folded is None else folded + th   # VPU vreg adds only
        acc_ref[...] += folded                               # no per-step XLU reduce

        @pl.when(j == nj - 1)
        def _():
            val = val_ref[...]
            t0 = jnp.tanh(val * (za + zb))                   # column 0 has x == val
            th0 = jnp.tanh(g0 + t0 * (g1 + g2 * t0))
            total = jnp.sum(acc_ref[...], axis=1, keepdims=True)  # one XLU reduce / B tile
            n_cols = jnp.asarray(ts * nj, jnp.float32)
            out_ref[...] = 0.5 * (n_cols - 1.0) + 0.5 * (total - th0)
    else:
        # Fallback: ts == S (single sequence tile per batch tile), S not a lane multiple.
        val = val_ref[...]
        x = x_ref[...]
        t = jnp.tanh(val * za + x * zb)
        th = jnp.tanh(g0 + t * (g1 + g2 * t))
        t0 = jnp.tanh(val * (za + zb))
        th0 = jnp.tanh(g0 + t0 * (g1 + g2 * t0))
        total = jnp.sum(th, axis=1, keepdims=True)
        out_ref[...] = 0.5 * (ts - 1.0) + 0.5 * (total - th0)


def _largest_tile(total, cap, quantum):
    """Largest d <= min(cap, total) with total % d == 0 and (d % quantum == 0 or d == total)."""
    cap = max(1, min(cap, total))
    for d in range(cap, 0, -1):
        if total % d == 0 and (d % quantum == 0 or d == total):
            return d
    return total


def count_architecture_forward(params, x, *, block_b=128, block_s=4096):
    """CountArchitecture('nsr') forward. x: (B, S), params: packed (5,) f32."""
    B, S = x.shape
    if x.dtype != jnp.float32:
        x = x.astype(jnp.float32)

    tb = _largest_tile(B, block_b, 8)
    # v7x has 2 TensorCores sharded over the "parallel" batch axis: prefer >= 2 B steps.
    if B // tb < 2:
        alt = _largest_tile(B, B // 2, 8)
        if alt % 8 == 0 and B % alt == 0 and B // alt >= 2:
            tb = alt
    ts = _largest_tile(S, block_s, LANES)

    assert B % tb == 0 and (tb % 8 == 0 or tb == B), "(8, .) sublane tiling on batch"
    assert S % ts == 0 and (ts % LANES == 0 or ts == S), "(., 128) lane tiling on sequence"

    val = x[:, 0:1]                      # X[:, 0] as its own small resident input
    grid = (B // tb, S // ts)

    # Double-buffered X tile + lane-padded val/out blocks + two (tb, 128) scratches.
    est_bytes = (2 * tb * ts + 6 * tb * LANES) * 4
    vmem_limit_bytes = int(min(max(2 * est_bytes, 32 * 1024 * 1024), 60 * 1024 * 1024))

    cost = pl.CostEstimate(
        flops=10 * B * S,
        transcendentals=2 * B * S,
        bytes_accessed=4 * (B * S + 2 * B),
    )

    return pl.pallas_call(
        count_nsr_kernel,
        out_shape=jax.ShapeDtypeStruct((B, 1), jnp.float32),
        grid_spec=pltpu.PrefetchScalarGridSpec(
            num_scalar_prefetch=1,
            grid=grid,
            in_specs=[
                pl.BlockSpec((tb, 1), lambda i, j, p: (i, 0)),    # val (resident across S)
                pl.BlockSpec((tb, ts), lambda i, j, p: (i, j)),   # X tile (streaming)
            ],
            out_specs=pl.BlockSpec((tb, 1), lambda i, j, p: (i, 0)),
            scratch_shapes=[
                pltpu.VMEM((tb, LANES), jnp.float32),   # lane-fold accumulator
                pltpu.VMEM((tb, LANES), jnp.float32),   # val*za lane-broadcast
            ],
        ),
        compiler_params=pltpu.CompilerParams(
            dimension_semantics=("parallel", "arbitrary"),
            vmem_limit_bytes=vmem_limit_bytes,
        ),
        cost_estimate=cost,
    )(params, val, x)


def init_nsr_params(key, storage=2):
    """Deterministic xavier_normal init matching NeuralStatusRegister.__init__ shapes."""
    k1, k2, k3, k4 = jax.random.split(key, 4)
    std_op = (2.0 / (storage + 1)) ** 0.5
    w_op1 = std_op * jax.random.normal(k1, (storage, 1), jnp.float32)
    w_op2 = std_op * jax.random.normal(k2, (storage, 1), jnp.float32)
    w_sign = jax.random.normal(k3, (1, 1), jnp.float32)    # xavier std = 1 for (1,1)
    w_zero = jax.random.normal(k4, (1, 1), jnp.float32)
    bias = jnp.zeros((1, 1), jnp.float32)
    zeta = 1.0
    return w_op1, w_op2, w_sign, w_zero, bias, zeta


def pack_params(w_op1, w_op2, w_sign, w_zero, bias, zeta):
    """Parameter-side preprocessing: softmax selectors + sigmoid->tanh / Horner fusion."""
    o1sel = jax.nn.softmax(w_op1, axis=0)[:, 0]   # (2,)
    o2sel = jax.nn.softmax(w_op2, axis=0)[:, 0]   # (2,)
    za = zeta * (o1sel[0] - o2sel[0])
    zb = zeta * (o1sel[1] - o2sel[1])
    c0 = bias[0, 0] + w_zero[0, 0]
    c1 = w_sign[0, 0]
    c2 = -2.0 * w_zero[0, 0]
    # 1 - sigmoid(c0 + c1*t + c2*t^2) == 0.5 + 0.5*tanh(g0 + t*(g1 + g2*t))
    g0 = -0.5 * c0
    g1 = -0.5 * c1
    g2 = -0.5 * c2
    return jnp.array([za, zb, g0, g1, g2], dtype=jnp.float32)


def reference_forward(w_op1, w_op2, w_sign, w_zero, bias, zeta, X):
    """Pure-JAX reference mirroring the PyTorch per-step math (original unfused formulas),
    vectorized over the sequence loop index i = 1..S-1."""
    o1sel = jax.nn.softmax(w_op1, axis=0)[:, 0]
    o2sel = jax.nn.softmax(w_op2, axis=0)[:, 0]
    val = X[:, 0:1]
    xi = X[:, 1:]
    o1 = val * o1sel[0] + xi * o1sel[1]
    o2 = val * o2sel[0] + xi * o2sel[1]
    d = o1 - o2
    t = jnp.tanh(zeta * d)
    sign = t * w_sign[0, 0]
    zero = (-1.0 + 2.0 * (1.0 - t * t)) * w_zero[0, 0]
    state = jax.nn.sigmoid(bias[0, 0] + sign + zero)
    # count += [state, 1-state] @ [0, 1] == (1 - state), summed over i = 1..S-1
    return jnp.sum(1.0 - state, axis=1, keepdims=True)


if __name__ == "__main__":
    key = jax.random.PRNGKey(0)
    k_param, k_x = jax.random.split(key)

    B, S = 16, 256          # batch, sequence length; storage = 2 (val + current element)
    w_op1, w_op2, w_sign, w_zero, bias, zeta = init_nsr_params(k_param, storage=2)
    params = pack_params(w_op1, w_op2, w_sign, w_zero, bias, zeta)

    X = jax.random.normal(k_x, (B, S), jnp.float32)
    ref = reference_forward(w_op1, w_op2, w_sign, w_zero, bias, zeta, X)

    # 1) Default config: single S tile, two B tiles (init + finalize in one step).
    out1 = jax.block_until_ready(count_architecture_forward(params, X))
    # 2) Small blocks so the multi-step accumulation over the "arbitrary" S axis,
    #    the j == 0 init and the last-j finalize are all exercised on a (2, 2) grid.
    out2 = jax.block_until_ready(
        count_architecture_forward(params, X, block_b=8, block_s=128))

    assert out1.shape == (B, 1) and out2.shape == (B, 1)
    assert jnp.allclose(out1, ref, atol=5e-3, rtol=1e-4), (out1, ref)
    assert jnp.allclose(out2, ref, atol=5e-3, rtol=1e-4), (out2, ref)

    print("KERNEL_OK")
</pallas_src>

<mosaic_0001>
module attributes {stable_mosaic.version = 11 : i64} {
  func.func @count_nsr_kernel(%arg0: i32, %arg1: i32, %arg2: memref<5xf32, #tpu.memory_space<smem>>, %arg3: memref<8x1xf32, #tpu.memory_space<vmem>>, %arg4: memref<8x256xf32, #tpu.memory_space<vmem>>, %arg5: memref<8x1xf32, #tpu.memory_space<vmem>>, %arg6: memref<8x128xf32, #tpu.memory_space<vmem>>, %arg7: memref<8x128xf32, #tpu.memory_space<vmem>>) attributes {dimension_semantics = [#tpu.dimension_semantics<parallel>, #tpu.dimension_semantics<arbitrary>], iteration_bounds = array<i64: 2, 1>, scalar_prefetch = 1 : i64, scratch_operands = 2 : i64, tpu.core_type = #tpu.core_type<tc>, window_params = [{transform_indices = @transform_0, window_bounds = array<i64: 8, 1>}, {transform_indices = @transform_1, window_bounds = array<i64: 8, 256>}, {transform_indices = @transform_2, window_bounds = array<i64: 8, 1>}]} {
    %c0 = arith.constant 0 : index
    %0 = memref.load %arg2[%c0] : memref<5xf32, #tpu.memory_space<smem>>
    %c1 = arith.constant 1 : index
    %1 = memref.load %arg2[%c1] : memref<5xf32, #tpu.memory_space<smem>>
    %c2 = arith.constant 2 : index
    %2 = memref.load %arg2[%c2] : memref<5xf32, #tpu.memory_space<smem>>
    %c3 = arith.constant 3 : index
    %3 = memref.load %arg2[%c3] : memref<5xf32, #tpu.memory_space<smem>>
    %c4 = arith.constant 4 : index
    %4 = memref.load %arg2[%c4] : memref<5xf32, #tpu.memory_space<smem>>
    %c0_i32 = arith.constant 0 : i32
    %5 = arith.cmpi eq, %arg1, %c0_i32 : i32
    %6 = arith.extui %5 : i1 to i32
    %c0_i32_0 = arith.constant 0 : i32
    %7 = arith.cmpi ne, %6, %c0_i32_0 : i32
    scf.if %7 {
      %cst = arith.constant 0.000000e+00 : f32
      %42 = vector.broadcast %cst : f32 to vector<8x128xf32>
      %c0_12 = arith.constant 0 : index
      %c0_13 = arith.constant 0 : index
      %43 = vector.load %arg6[%c0_12, %c0_13] : memref<8x128xf32, #tpu.memory_space<vmem>>, vector<8x128xf32>
      tpu.vector_store %arg6[%c0_12, %c0_13], %42 {strides = array<i32>} : memref<8x128xf32, #tpu.memory_space<vmem>>, vector<8x128xf32>,
      %c0_14 = arith.constant 0 : index
      %c0_15 = arith.constant 0 : index
      %44 = vector.load %arg3[%c0_14, %c0_15] : memref<8x1xf32, #tpu.memory_space<vmem>>, vector<8x1xf32>
      %45 = vector.broadcast %0 : f32 to vector<8x1xf32>
      %46 = arith.mulf %44, %45 : vector<8x1xf32>
      %47 = vector.shape_cast %46 : vector<8x1xf32> to vector<8x1xf32>
      %48 = vector.broadcast %47 : vector<8x1xf32> to vector<8x128xf32>
      %c0_16 = arith.constant 0 : index
      %c0_17 = arith.constant 0 : index
      %49 = vector.load %arg7[%c0_16, %c0_17] : memref<8x128xf32, #tpu.memory_space<vmem>>, vector<8x128xf32>
      tpu.vector_store %arg7[%c0_16, %c0_17], %48 {strides = array<i32>} : memref<8x128xf32, #tpu.memory_space<vmem>>, vector<8x128xf32>,
    } else {
    }
    %c0_1 = arith.constant 0 : index
    %c0_2 = arith.constant 0 : index
    %8 = vector.load %arg7[%c0_1, %c0_2] : memref<8x128xf32, #tpu.memory_space<vmem>>, vector<8x128xf32>
    %c0_3 = arith.constant 0 : index
    %c0_4 = arith.constant 0 : index
    %9 = vector.load %arg4[%c0_3, %c0_4] : memref<8x256xf32, #tpu.memory_space<vmem>>, vector<8x128xf32>
    %10 = vector.broadcast %1 : f32 to vector<8x128xf32>
    %11 = arith.mulf %9, %10 : vector<8x128xf32>
    %12 = arith.addf %8, %11 : vector<8x128xf32>
    %13 = math.tanh %12 : vector<8x128xf32>
    %14 = vector.broadcast %4 : f32 to vector<8x128xf32>
    %15 = arith.mulf %14, %13 : vector<8x128xf32>
    %16 = vector.broadcast %3 : f32 to vector<8x128xf32>
    %17 = arith.addf %16, %15 : vector<8x128xf32>
    %18 = arith.mulf %13, %17 : vector<8x128xf32>
    %19 = vector.broadcast %2 : f32 to vector<8x128xf32>
    %20 = arith.addf %19, %18 : vector<8x128xf32>
    %21 = math.tanh %20 : vector<8x128xf32>
    %c0_5 = arith.constant 0 : index
    %c128 = arith.constant 128 : index
    %22 = vector.load %arg4[%c0_5, %c128] : memref<8x256xf32, #tpu.memory_space<vmem>>, vector<8x128xf32>
    %23 = vector.broadcast %1 : f32 to vector<8x128xf32>
    %24 = arith.mulf %22, %23 : vector<8x128xf32>
    %25 = arith.addf %8, %24 : vector<8x128xf32>
    %26 = math.tanh %25 : vector<8x128xf32>
    %27 = vector.broadcast %4 : f32 to vector<8x128xf32>
    %28 = arith.mulf %27, %26 : vector<8x128xf32>
    %29 = vector.broadcast %3 : f32 to vector<8x128xf32>
    %30 = arith.addf %29, %28 : vector<8x128xf32>
    %31 = arith.mulf %26, %30 : vector<8x128xf32>
    %32 = vector.broadcast %2 : f32 to vector<8x128xf32>
    %33 = arith.addf %32, %31 : vector<8x128xf32>
    %34 = math.tanh %33 : vector<8x128xf32>
    %35 = arith.addf %21, %34 : vector<8x128xf32>
    %c0_6 = arith.constant 0 : index
    %c0_7 = arith.constant 0 : index
    %36 = vector.load %arg6[%c0_6, %c0_7] : memref<8x128xf32, #tpu.memory_space<vmem>>, vector<8x128xf32>
    %37 = arith.addf %36, %35 : vector<8x128xf32>
    %c0_8 = arith.constant 0 : index
    %c0_9 = arith.constant 0 : index
    %38 = vector.load %arg6[%c0_8, %c0_9] : memref<8x128xf32, #tpu.memory_space<vmem>>, vector<8x128xf32>
    tpu.vector_store %arg6[%c0_8, %c0_9], %37 {strides = array<i32>} : memref<8x128xf32, #tpu.memory_space<vmem>>, vector<8x128xf32>,
    %c0_i32_10 = arith.constant 0 : i32
    %39 = arith.cmpi eq, %arg1, %c0_i32_10 : i32
    %40 = arith.extui %39 : i1 to i32
    %c0_i32_11 = arith.constant 0 : i32
    %41 = arith.cmpi ne, %40, %c0_i32_11 : i32
    scf.if %41 {
      %c0_12 = arith.constant 0 : index
      %c0_13 = arith.constant 0 : index
      %42 = vector.load %arg3[%c0_12, %c0_13] : memref<8x1xf32, #tpu.memory_space<vmem>>, vector<8x1xf32>
      %43 = arith.addf %0, %1 : f32
      %44 = vector.broadcast %43 : f32 to vector<8x1xf32>
      %45 = arith.mulf %42, %44 : vector<8x1xf32>
      %46 = math.tanh %45 : vector<8x1xf32>
      %47 = vector.broadcast %4 : f32 to vector<8x1xf32>
      %48 = arith.mulf %47, %46 : vector<8x1xf32>
      %49 = vector.broadcast %3 : f32 to vector<8x1xf32>
      %50 = arith.addf %49, %48 : vector<8x1xf32>
      %51 = arith.mulf %46, %50 : vector<8x1xf32>
      %52 = vector.broadcast %2 : f32 to vector<8x1xf32>
      %53 = arith.addf %52, %51 : vector<8x1xf32>
      %54 = math.tanh %53 : vector<8x1xf32>
      %c0_14 = arith.constant 0 : index
      %c0_15 = arith.constant 0 : index
      %55 = vector.load %arg6[%c0_14, %c0_15] : memref<8x128xf32, #tpu.memory_space<vmem>>, vector<8x128xf32>
      %cst = arith.constant dense<0.000000e+00> : vector<8xf32>
      %56 = vector.multi_reduction <add>, %55, %cst [1] : vector<8x128xf32> to vector<8xf32>
      %57 = vector.shape_cast %56 : vector<8xf32> to vector<8x1xf32>
      %cst_16 = arith.constant 2.560000e+02 : f32
      %cst_17 = arith.constant 1.000000e+00 : f32
      %58 = arith.subf %cst_16, %cst_17 : f32
      %cst_18 = arith.constant 5.000000e-01 : f32
      %59 = arith.mulf %cst_18, %58 : f32
      %60 = arith.subf %57, %54 : vector<8x1xf32>
      %cst_19 = arith.constant 5.000000e-01 : f32
      %61 = vector.broadcast %cst_19 : f32 to vector<8x1xf32>
      %62 = arith.mulf %61, %60 : vector<8x1xf32>
      %63 = vector.broadcast %59 : f32 to vector<8x1xf32>
      %64 = arith.addf %63, %62 : vector<8x1xf32>
      %c0_20 = arith.constant 0 : index
      %c0_21 = arith.constant 0 : index
      %65 = vector.load %arg5[%c0_20, %c0_21] : memref<8x1xf32, #tpu.memory_space<vmem>>, vector<8x1xf32>
      tpu.vector_store %arg5[%c0_20, %c0_21], %64 {strides = array<i32>} : memref<8x1xf32, #tpu.memory_space<vmem>>, vector<8x1xf32>,
    } else {
    }
    return
  }
  func.func @transform_0(%arg0: i32, %arg1: i32, %arg2: memref<5xf32, #tpu.memory_space<smem>>) -> (i32, i32) {
    %c0_i32 = arith.constant 0 : i32
    %c0_i32_0 = arith.constant 0 : i32
    return %arg0, %c0_i32 : i32, i32
  }
  func.func @transform_1(%arg0: i32, %arg1: i32, %arg2: memref<5xf32, #tpu.memory_space<smem>>) -> (i32, i32) {
    %c0_i32 = arith.constant 0 : i32
    return %arg0, %arg1 : i32, i32
  }
  func.func @transform_2(%arg0: i32, %arg1: i32, %arg2: memref<5xf32, #tpu.memory_space<smem>>) -> (i32, i32) {
    %c0_i32 = arith.constant 0 : i32
    %c0_i32_0 = arith.constant 0 : i32
    return %arg0, %c0_i32 : i32, i32
  }
}

</mosaic_0001>

<llo_original>
// kernel: tpu_custom_call.1
$region0: #{tpu_custom_call.1}
  #allocation0 [shape = 'u32[]', space=smem, size = 0x4, offset = 0x4, fixed_abs, tag = 'smem constant byte address 0x4 - core index']
  #allocation1 [shape = 'u32[72,128]{1,0:T(1,128)}', space=vmem, size = 0x9000, scoped, tag = 'internal scratch']
  #allocation2 [shape = 'f32[8,128]{1,0:T(8,128)}', space=vmem, size = 0x1000, scoped, tag = 'scratch operand']
  #allocation3 [shape = 'f32[8,128]{1,0:T(8,128)}', space=vmem, size = 0x1000, scoped, tag = 'scratch operand']
  #allocation4 [shape = 's32[1]{0}', space=sflag, size = 0x4, scoped, tag = 'scoped memory for tpu_custom_call.1']
  #allocation5 [shape = 'u8[512]{0}', space=smem, size = 0x200, scoped, tag = 'prefetched SMEM operand 0']
  %s0 = inlined_call_operand.vmem [shape: f32[5], index: 0, kind: input, shape index: {}]
  %s1 = inlined_call_operand.vmem [shape: f32[16,1], index: 1, kind: input, shape index: {}]
  %s2 = inlined_call_operand.hbm [shape: f32[16,256], index: 2, kind: input, shape index: {}]
  %s3 = inlined_call_operand.vmem [shape: f32[16,1], index: 3, kind: output, shape index: {}]
  %s4 = sld [smem:[#allocation0]]
  $region53: #{tpu_custom_call.1} parent=0
    _
  %s6 = ssub.s32 1, %s4
  %s7 = scalar_select 0, %s6, %s4
  %s9 = sshll.u32 %s0, 4
  %s10 = int_to_ptr.vmem [resolvable:$true] %s9
  %12 = dma.vmem_to_smem %s10, 16, [#allocation5], [#allocation4]
  %14 = dma.done [#allocation4], 16
  %15 = sfence
  $region1: #{tpu_custom_call.1} parent=0
    #allocation6 [shape = 'u8[16384]{0}', space=vmem, size = 0x4000, scoped, tag = 'input window, operand 2']
    #allocation7 [shape = 's32[2]{0}', space=sflag, size = 0x8, scoped, tag = 'scoped memory for tpu_custom_call.1']
    %16 = vsyncpa [#allocation7], 0
    %s17 = scalar_lea.sflag [#allocation7], 1
    %18 = vsyncpa %s17, 0
    loop: start=0, step=1, limit=4
    $region2: #{tpu_custom_call.1} parent=1 // loop_pre_header
      _
    $region3: #{tpu_custom_call.1} parent=1 // loop_header
      %s20 = sphi 0, %s24
      %p21 = scmp.ge.s32.totalorder %s20, 4
      %s27 = sphi 0, %s39
      %s28 = sphi 0, %s35
      %s29 = sphi 0, %s27
      %s30 = sphi 0, %s28
      %s31 = sphi 0, %s29
      %s32 = sphi 0, %s30
      %s42 = sphi 0, %s44
      %s45 = sphi 0, %s42
      %s46 = sphi 0, %s45
      %s62 = sphi 0, %s46
      %s70 = sphi 0, %s72
      %s73 = sphi 0, %s70
      %s74 = sphi 0, %s73
      %s90 = sphi 0, %s74
      %s96 = sphi 0, %s98
      %s99 = sphi 0, %s96
      %s100 = sphi 0, %s99
      %s116 = sphi 0, %s100
    $region4: #{tpu_custom_call.1} parent=1 // loop_header_branch
      %23 = sbr.rel (%p21) target = $region8
    $region5: #{tpu_custom_call.1} parent=1 // loop_body
      %s25 = ssub.s32 %s20, 1
      %s26 = ssub.s32 %s20, 2
      %s33 = sadd.s32 1, %s28
      %p34 = scmp.ge.s32.totalorder %s33, 1
      %s35 = scalar_select %p34, 0, %s33
      %s36 = sadd.s32 1, %s27
      %s37 = scalar_select %p34, %s36, %s27
      %p38 = scmp.ge.s32.totalorder %s37, 2
      %s39 = scalar_select %p38, 0, %s37
      %s40 = ssub.s32 %s27, %s39
      %p41 = scmp.eq.s32.totalorder %s40, 0
      %s43 = sadd.s32 %s42, 1
      %s44 = scalar_select %p41, %s42, %s43
      %p47 = pneg %p41
      %p48 = scmp.eq.s32.totalorder %s20, 1
      %p49 = por %p47, %p48
      %p50 = scmp.ne.s32.totalorder %s42, %s45
      %p51 = scmp.eq.s32.totalorder %s20, 0
      %p52 = por %p50, %p51
      %p53 = scmp.ne.s32.totalorder %s42, %s45
      %p54 = scmp.eq.s32.totalorder %s25, 1
      %p55 = por %p53, %p54
      %p56 = scmp.ne.s32.totalorder %s45, %s46
      %p57 = scmp.eq.s32.totalorder %s25, 0
      %p58 = por %p56, %p57
      %p59 = scmp.ne.s32.totalorder %s45, %s46
      %p60 = scmp.eq.s32.totalorder %s26, 1
      %p61 = por %p59, %p60
      %p63 = scmp.ne.s32.totalorder %s46, %s62
      %p64 = scmp.eq.s32.totalorder %s26, 0
      %p65 = por %p63, %p64
      %s66 = ssub.s32 %s27, %s39
      %s67 = ssub.s32 %s28, %s35
      %s68 = sor.u32 %s66, %s67
      %p69 = scmp.eq.s32.totalorder %s68, 0
      %s71 = sadd.s32 %s70, 1
      %s72 = scalar_select %p69, %s70, %s71
      %p75 = pneg %p69
      %p76 = scmp.eq.s32.totalorder %s20, 1
      %p77 = por %p75, %p76
      %p78 = scmp.ne.s32.totalorder %s70, %s73
      %p79 = scmp.eq.s32.totalorder %s20, 0
      %p80 = por %p78, %p79
      %p81 = scmp.ne.s32.totalorder %s70, %s73
      %p82 = scmp.eq.s32.totalorder %s25, 1
      %p83 = por %p81, %p82
      %p84 = scmp.ne.s32.totalorder %s73, %s74
      %p85 = scmp.eq.s32.totalorder %s25, 0
      %p86 = por %p84, %p85
      %p87 = scmp.ne.s32.totalorder %s73, %s74
      %p88 = scmp.eq.s32.totalorder %s26, 1
      %p89 = por %p87, %p88
      %p91 = scmp.ne.s32.totalorder %s74, %s90
      %p92 = scmp.eq.s32.totalorder %s26, 0
      %p93 = por %p91, %p92
      %s94 = ssub.s32 %s27, %s39
      %p95 = scmp.eq.s32.totalorder %s94, 0
      %s97 = sadd.s32 %s96, 1
      %s98 = scalar_select %p95, %s96, %s97
      %p101 = pneg %p95
      %p102 = scmp.eq.s32.totalorder %s20, 1
      %p103 = por %p101, %p102
      %p104 = scmp.ne.s32.totalorder %s96, %s99
      %p105 = scmp.eq.s32.totalorder %s20, 0
      %p106 = por %p104, %p105
      %p107 = scmp.ne.s32.totalorder %s96, %s99
      %p108 = scmp.eq.s32.totalorder %s25, 1
      %p109 = por %p107, %p108
      %p110 = scmp.ne.s32.totalorder %s99, %s100
      %p111 = scmp.eq.s32.totalorder %s25, 0
      %p112 = por %p110, %p111
      %p113 = scmp.ne.s32.totalorder %s99, %s100
      %p114 = scmp.eq.s32.totalorder %s26, 1
      %p115 = por %p113, %p114
      %p117 = scmp.ne.s32.totalorder %s100, %s116
      %p118 = scmp.eq.s32.totalorder %s26, 0
      %p119 = por %p117, %p118
      %p120 = scmp.le.s32.totalorder 1, %s20
      %p121 = scmp.lt.s32.totalorder %s20, 3
      %p122 = pnand %p120, %p121
      %p123 = pneg %p122
      // Predicated region
      $region9: #{tpu_custom_call.1} parent=5 // pred_check
        _
      $region10: #{tpu_custom_call.1} parent=5 // pred_check_branch
        %125 = sbr.rel (%p122) target = $region12
      $region11: #{tpu_custom_call.1} parent=5 // pred_region
        %s126 = ssub.s32 %s20, 1
      $region12: #{tpu_custom_call.1} parent=5 // pred_fallthru
        _
      %p127 = scmp.lt.s32.totalorder %s20, 2
      // Predicated region
      $region13: #{tpu_custom_call.1} parent=5 // pred_check
        %p128 = pneg %p127
      $region14: #{tpu_custom_call.1} parent=5 // pred_check_branch
        %130 = sbr.rel (%p128) target = $region16
      $region15: #{tpu_custom_call.1} parent=5 // pred_region
        // Predicated region
        $region17: #{tpu_custom_call.1} parent=15 // pred_check
          %p131 = pneg %p52
        $region18: #{tpu_custom_call.1} parent=15 // pred_check_branch
          %133 = sbr.rel (%p131) target = $region20
        $region19: #{tpu_custom_call.1} parent=15 // pred_region
          %p134 = scmp.lt.s32.totalorder %s27, 1
          %s135 = scalar_select %p134, %s27, 1
          %s136 = smul.addr %s135, 8
          %s137 = scalar_lea.vmem %s1, %s136
        $region20: #{tpu_custom_call.1} parent=15 // pred_fallthru
          _
        // Predicated region
        $region21: #{tpu_custom_call.1} parent=15 // pred_check
          %p138 = pneg %p80
        $region22: #{tpu_custom_call.1} parent=15 // pred_check_branch
          %140 = sbr.rel (%p138) target = $region24
        $region23: #{tpu_custom_call.1} parent=15 // pred_region
          %s141 = sand.u32 %s70, 1
          %s142 = scalar_lea.sflag [#allocation7], %s141
          %s143 = sand.u32 %s70, 1
          %s144 = smul.addr %s143, 16
          %s145 = scalar_lea.vmem [#allocation6], %s144
          %s146 = smul.u32 2, %s28
          %148 = vsyncadd %s142, 0
          %s149 = smul.addr %s27, 2
          %s150 = sadd.s32 %s146, %s149
          %s151 = smul.addr %s150, 8
          %s152 = scalar_lea.hbm %s2, %s151
          %s154 = sshll.u32 %s152, 4
          %s155 = int_to_ptr.hbm [resolvable:$true] %s154
          %s156 = sshll.u32 %s145, 4
          %s157 = int_to_ptr.vmem [resolvable:$true] %s156
          %159 = dma.hbm_to_vmem [thread:$0]  %s155, 256, %s157, %s142
        $region24: #{tpu_custom_call.1} parent=15 // pred_fallthru
          _
      $region16: #{tpu_custom_call.1} parent=5 // pred_fallthru
        _
      %p160 = scmp.le.s32.totalorder 1, %s20
      %p161 = scmp.lt.s32.totalorder %s20, 3
      %p162 = pnand %p160, %p161
      %p163 = pneg %p162
      // Predicated region
      $region25: #{tpu_custom_call.1} parent=5 // pred_check
        _
      $region26: #{tpu_custom_call.1} parent=5 // pred_check_branch
        %165 = sbr.rel (%p162) target = $region28
      $region27: #{tpu_custom_call.1} parent=5 // pred_region
        %s166 = ssub.s32 %s20, 1
        %s167 = sand.u32 %s73, 1
        %s168 = scalar_lea.sflag [#allocation7], %s167
        %s169 = sand.u32 %s73, 1
        %s170 = smul.addr %s169, 16
        %s171 = scalar_lea.vmem [#allocation6], %s170
        // Predicated region
        $region29: #{tpu_custom_call.1} parent=27 // pred_check
          %p172 = pneg %p86
        $region30: #{tpu_custom_call.1} parent=27 // pred_check_branch
          %174 = sbr.rel (%p172) target = $region32
        $region31: #{tpu_custom_call.1} parent=27 // pred_region
          %176 = dma.done %s168, 256
        $region32: #{tpu_custom_call.1} parent=27 // pred_fallthru
          _
        %p177 = scmp.lt.s32.totalorder %s29, 1
        %s178 = scalar_select %p177, %s29, 1
        %s179 = smul.addr %s178, 8
        %s180 = scalar_lea.vmem %s1, %s179
        %p181 = pneg %p58
        %p182 = pneg %p55
        %s183 = sand.u32 %s73, 1
        %s184 = scalar_lea.sflag [#allocation7], %s183
        %s185 = sand.u32 %s73, 1
        %s186 = smul.addr %s185, 16
        %s187 = scalar_lea.vmem [#allocation6], %s186
        %p188 = pneg %p86
        %p189 = pneg %p83
        %p190 = pneg %p112
        %p191 = pneg %p109
        %p192 = scmp.lt.s32.totalorder %s29, 1
        %s193 = scalar_select %p192, %s29, 1
        %s194 = smul.addr %s193, 8
        %s195 = scalar_lea.vmem %s3, %s194
        %p196 = scmp.lt.s32.totalorder %s29, 1
        %s197 = scalar_select %p196, %s29, 1
        %s198 = smul.addr %s197, 8
        %s199 = scalar_lea.vmem %s1, %s198
        %s200 = smul.u32 2, %s30
        %p201 = scmp.lt.s32.totalorder %s29, 1
        %s202 = scalar_select %p201, %s29, 1
        %s203 = smul.addr %s202, 8
        %s204 = scalar_lea.vmem %s3, %s203
        %s205 = sld [smem:[#allocation5]]
        %s206 = sld [smem:[#allocation5 + $0x1]]
        %s207 = sld [smem:[#allocation5 + $0x2]]
        %s208 = sld [smem:[#allocation5 + $0x3]]
        %s209 = sld [smem:[#allocation5 + $0x4]]
        %p210 = scmp.eq.s32.totalorder %s30, 0
        // Predicated region
        $region33: #{tpu_custom_call.1} parent=27 // pred_check
          %p211 = pneg %p210
        $region34: #{tpu_custom_call.1} parent=27 // pred_check_branch
          %213 = sbr.rel (%p211) target = $region36
        $region35: #{tpu_custom_call.1} parent=27 // pred_region
          %214 = vst [vmem:[#allocation2] sm:$0xff] 0.0
          %v215 = vld [vmem:[%s199] sm:$0xff]
          %v216 = vstv %s205
          %v217 = vmul.f32 %v215, %v216
          %219 = vset.pattern.permute.xlu0 0
          %220 = vperm.xlu0 %219, %v217
          %v221 = vpop.permute.xlu0 %220
          %223 = vst [vmem:[#allocation3] sm:$0xff] %v221
        $region36: #{tpu_custom_call.1} parent=27 // pred_fallthru
          _
        %v224 = vld [vmem:[#allocation3] sm:$0xff]
        %v225 = vld [vmem:[%s171] sm:$0xff]
        %v226 = vstv %s206
        %v227 = vmul.f32 %v225, %v226
        %v228 = vadd.f32 %v224, %v227
        %v229 = vtanh.pop %v228
        %v230 = vstv %s209
        %v231 = vmul.f32 %v230, %v229
        %v232 = vstv %s208
        %v233 = vadd.f32 %v232, %v231
        %v234 = vmul.f32 %v229, %v233
        %v235 = vstv %s207
        %v236 = vadd.f32 %v235, %v234
        %v237 = vtanh.pop %v236
        %v238 = vld [vmem:[%s171 + $0x8] sm:$0xff]
        %v239 = vmul.f32 %v238, %v226
        %v240 = vadd.f32 %v224, %v239
        %v241 = vtanh.pop %v240
        %v242 = vmul.f32 %v230, %v241
        %v243 = vadd.f32 %v232, %v242
        %v244 = vmul.f32 %v241, %v243
        %v245 = vadd.f32 %v235, %v244
        %v246 = vtanh.pop %v245
        %v247 = vadd.f32 %v237, %v246
        %v248 = vld [vmem:[#allocation2] sm:$0xff]
        %v249 = vadd.f32 %v248, %v247
        %250 = vst [vmem:[#allocation2] sm:$0xff] %v249
        // Predicated region
        $region37: #{tpu_custom_call.1} parent=27 // pred_check
          %p251 = pneg %p210
        $region38: #{tpu_custom_call.1} parent=27 // pred_check_branch
          %253 = sbr.rel (%p251) target = $region40
        $region39: #{tpu_custom_call.1} parent=27 // pred_region
          %v254 = vld [vmem:[%s199] sm:$0xff]
          %s255 = sadd.f32 %s205, %s206
          %v256 = vstv %s255
          %v257 = vmul.f32 %v254, %v256
          %v258 = vtanh.pop %v257
          %v259 = vmul.f32 %v230, %v258
          %v260 = vadd.f32 %v232, %v259
          %v261 = vmul.f32 %v258, %v260
          %v262 = vadd.f32 %v235, %v261
          %v263 = vtanh.pop %v262
          %v264 = vld [vmem:[#allocation2] sm:$0xff]
          %265 = vadd.xlane.f32.xlu0 %v264
          %v266 = vpop.xlane.xlu0 %265
          %v267 = vsub.f32 %v266, %v263
          %v268 = vmul.f32 %v267, 0.5
          %v269 = vadd.f32 %v268, 127.5
          %vm270 = vcmask 7168
          %271 = vst.msk [vmem:[%s204] sm:$0xff] %vm270, %v269
        $region40: #{tpu_custom_call.1} parent=27 // pred_fallthru
          _
        %p272 = scmp.lt.s32.totalorder %s29, 1
        %s273 = scalar_select %p272, %s29, 1
        %s274 = smul.addr %s273, 8
        %s275 = scalar_lea.vmem %s3, %s274
        // Predicated region
        $region41: #{tpu_custom_call.1} parent=27 // pred_check
          %p276 = pneg %p109
        $region42: #{tpu_custom_call.1} parent=27 // pred_check_branch
          %278 = sbr.rel (%p276) target = $region44
        $region43: #{tpu_custom_call.1} parent=27 // pred_region
          _
        $region44: #{tpu_custom_call.1} parent=27 // pred_fallthru
          _
      $region28: #{tpu_custom_call.1} parent=5 // pred_fallthru
        _
      %p279 = scmp.le.s32.totalorder 2, %s20
      // Predicated region
      $region45: #{tpu_custom_call.1} parent=5 // pred_check
        %p280 = pneg %p279
      $region46: #{tpu_custom_call.1} parent=5 // pred_check_branch
        %282 = sbr.rel (%p280) target = $region48
      $region47: #{tpu_custom_call.1} parent=5 // pred_region
        %s283 = ssub.s32 %s20, 2
        // Predicated region
        $region49: #{tpu_custom_call.1} parent=47 // pred_check
          %p284 = pneg %p115
        $region50: #{tpu_custom_call.1} parent=47 // pred_check_branch
          %286 = sbr.rel (%p284) target = $region52
        $region51: #{tpu_custom_call.1} parent=47 // pred_region
          %p287 = scmp.lt.s32.totalorder %s31, 1
          %s288 = scalar_select %p287, %s31, 1
          %s289 = smul.addr %s288, 8
          %s290 = scalar_lea.vmem %s3, %s289
        $region52: #{tpu_custom_call.1} parent=47 // pred_fallthru
          _
      $region48: #{tpu_custom_call.1} parent=5 // pred_fallthru
        _
    $region6: #{tpu_custom_call.1} parent=1 // loop_footer
      %s24 = sadd.s32 1, %s20
    $region7: #{tpu_custom_call.1} parent=1 // loop_footer_branch
      %19 = sbr.rel target = $region3
    $region8: #{tpu_custom_call.1} parent=1 // loop_exit
      _
    %291 = vsyncpa [#allocation7], 1
    %s292 = scalar_lea.sflag [#allocation7], 1
    %293 = vsyncpa %s292, 1

</llo_original>
